<compile_context>
chip_gen: v7x
topology: tpu7x:2x2x1
jax: 0.10.0
libtpu: 0.0.40
codegen_flags: <defaults>
</compile_context>

<pallas_src>
import functools

import jax
import jax.numpy as jnp
from jax.experimental import pallas as pl
from jax.experimental.pallas import tpu as pltpu


def _glu_mlp_grouped_kernel(block_expert_ref, block_valid_ref,
                            x_ref, w1h_ref, w1g_ref, w2_ref, gate_ref,
                            o_ref, acc_ref):
    b = pl.program_id(0)      # padded token block (grouped by expert)
    hc = pl.program_id(1)     # hidden (H) tile — reduction into acc_ref

    # Zero the f32 accumulator at the start of each block's H sweep.
    @pl.when(hc == 0)
    def _():
        acc_ref[...] = jnp.zeros_like(acc_ref)

    # Skip compute for tail blocks beyond the actual padded block count.
    @pl.when(block_valid_ref[b] > 0)
    def _():
        x = x_ref[...]            # (TN, D)  bf16 (grouped/padded tokens of one expert)
        w1h = w1h_ref[0]          # (D, TH)  bf16  (pre-transposed h half, H chunk hc)
        w1g = w1g_ref[0]          # (D, TH)  bf16  (pre-transposed gate half, H chunk hc)
        w2 = w2_ref[0]            # (TH, D)  bf16  (pre-transposed, H chunk hc)

        h = jnp.dot(x, w1h, preferred_element_type=jnp.float32)   # (TN, TH)
        g = jnp.dot(x, w1g, preferred_element_type=jnp.float32)   # (TN, TH)

        # SiLU(gates) * h, scaled by the per-copy routing weight on the smaller operand.
        act = gate_ref[...] * (g * jax.nn.sigmoid(g)) * h          # (TN, TH) f32

        acc_ref[...] += jnp.dot(act.astype(w2.dtype), w2,
                                preferred_element_type=jnp.float32)  # (TN, D)

    # Write the grouped output block once, after the last H chunk.
    @pl.when(hc == pl.num_programs(1) - 1)
    def _():
        o_ref[...] = acc_ref[...].astype(o_ref.dtype)


def _round_up(x, m):
    return (x + m - 1) // m * m


def _vmem_limit_bytes():
    """~85% of physical VMEM (≈54 MiB on v7x, ≈108 MiB on v5e/v6e); None -> default."""
    try:
        info = pltpu.get_tpu_info()
        for name in ("vmem_capacity_bytes", "vmem_size_bytes", "vmem_bytes"):
            cap = getattr(info, name, None)
            if cap:
                return int(cap * 0.85)
    except Exception:
        pass
    return None


@functools.partial(jax.jit, static_argnames=("tn", "th"))
def glu_mlp_forward(x, w1, w2, expert_p, expert_idxs, *, tn=512, th=1024):
    """x: (..., D); w1: (E, 2H, D); w2: (E, D, H); expert_p/expert_idxs: (..., K)."""
    x_shape = x.shape
    D = x_shape[-1]
    E, twoH, _ = w1.shape
    H = twoH // 2
    K = expert_p.shape[-1]

    x2 = x.reshape(-1, D)
    p2 = expert_p.reshape(-1, K).astype(jnp.float32)
    idx2 = expert_idxs.reshape(-1, K).astype(jnp.int32)
    N = x2.shape[0]
    NK = N * K

    # ---- tile sizes: token block (multiple of 16 for bf16), optional H tiling ----
    tn = _round_up(max(int(tn), 16), 16)
    TN = min(tn, _round_up(NK, 16))
    if H > th and th % 128 == 0 and H % th == 0:
        TH = th
    else:
        TH = H
    num_h = H // TH

    # Static upper bound on padded blocks: sum_e ceil(c_e/TN) <= floor(NK/TN) + E.
    num_blocks = NK // TN + E
    NKP = num_blocks * TN

    # ---- grouped (sorted-by-expert) routing bookkeeping (no (N,K,E) one-hot) ----
    flat_e = idx2.reshape(-1)                                   # (NK,)
    flat_p = p2.reshape(-1)                                     # (NK,)
    flat_t = jnp.arange(NK, dtype=jnp.int32) // K               # (NK,) source token

    order = jnp.argsort(flat_e)
    sorted_e = flat_e[order]
    sorted_p = flat_p[order]
    sorted_t = flat_t[order]

    counts = jnp.bincount(flat_e, length=E).astype(jnp.int32)   # (E,) copies per expert
    blocks_per_e = (counts + TN - 1) // TN                      # (E,) padded blocks per expert
    zero1 = jnp.zeros((1,), jnp.int32)
    group_start = jnp.concatenate([zero1, jnp.cumsum(counts)[:-1]])       # exclusive cumsum
    block_start = jnp.concatenate([zero1, jnp.cumsum(blocks_per_e)[:-1]])
    blocks_cum = jnp.cumsum(blocks_per_e)                       # inclusive cumsum
    total_blocks = blocks_cum[-1]                               # traced actual block count

    # Destination padded slot of each sorted copy inside its expert's block range.
    rank = jnp.arange(NK, dtype=jnp.int32) - group_start[sorted_e]
    pad_slot = block_start[sorted_e] * TN + rank                # (NK,), unique

    # One index array drives both the input gather and the output scatter;
    # row N is a dummy zero row for padding slots / unused blocks.
    src_row = jnp.full((NKP,), N, jnp.int32).at[pad_slot].set(sorted_t)
    gate_g = jnp.zeros((NKP,), jnp.float32).at[pad_slot].set(sorted_p)[:, None]  # (NKP, 1)

    x2p = jnp.concatenate([x2.astype(jnp.bfloat16),
                           jnp.zeros((1, D), jnp.bfloat16)], axis=0)
    xg = x2p[src_row]                                           # (NKP, D) grouped tokens

    # Per-block expert id; unused tail blocks repeat the last valid block's expert so
    # their weight index is unchanged and the DMA is elided.
    b_idx = jnp.arange(num_blocks, dtype=jnp.int32)
    b_clamped = jnp.minimum(b_idx, total_blocks - 1)
    block_expert = jnp.searchsorted(blocks_cum, b_clamped, side="right").astype(jnp.int32)
    block_valid = (b_idx < total_blocks).astype(jnp.int32)

    # ---- expert weights: pre-split halves, pre-transposed, bf16 for the MXU ----
    w1h_t = jnp.transpose(w1[:, :H, :], (0, 2, 1)).astype(jnp.bfloat16)   # (E, D, H)
    w1g_t = jnp.transpose(w1[:, H:, :], (0, 2, 1)).astype(jnp.bfloat16)   # (E, D, H)
    w2_t = jnp.transpose(w2, (0, 2, 1)).astype(jnp.bfloat16)              # (E, H, D)

    dim_sems = ("parallel", "arbitrary")   # blocks parallel; H reduction innermost
    vmem_limit = _vmem_limit_bytes()
    if vmem_limit is not None:
        compiler_params = pltpu.CompilerParams(dimension_semantics=dim_sems,
                                               vmem_limit_bytes=vmem_limit)
    else:
        compiler_params = pltpu.CompilerParams(dimension_semantics=dim_sems)

    y_g = pl.pallas_call(
        _glu_mlp_grouped_kernel,
        out_shape=jax.ShapeDtypeStruct((NKP, D), x.dtype),
        grid_spec=pltpu.PrefetchScalarGridSpec(
            num_scalar_prefetch=2,                       # block_expert, block_valid -> SMEM
            grid=(num_blocks, num_h),
            in_specs=[
                pl.BlockSpec((TN, D), lambda b, h, be, bv: (b, 0)),           # grouped x
                pl.BlockSpec((1, D, TH), lambda b, h, be, bv: (be[b], 0, h)),  # W1 h half
                pl.BlockSpec((1, D, TH), lambda b, h, be, bv: (be[b], 0, h)),  # W1 gate half
                pl.BlockSpec((1, TH, D), lambda b, h, be, bv: (be[b], h, 0)),  # W2
                pl.BlockSpec((TN, 1), lambda b, h, be, bv: (b, 0)),            # routing weight
            ],
            out_specs=pl.BlockSpec((TN, D), lambda b, h, be, bv: (b, 0)),      # grouped y
            scratch_shapes=[pltpu.VMEM((TN, D), jnp.float32)],                 # f32 accumulator
        ),
        compiler_params=compiler_params,
    )(block_expert, block_valid, xg, w1h_t, w1g_t, w2_t, gate_g)

    # Scatter-add the grouped per-copy outputs back to tokens (row N collects padding).
    y_full = jnp.zeros((N + 1, D), jnp.float32).at[src_row].add(y_g.astype(jnp.float32))
    return y_full[:N].astype(x.dtype).reshape(*x_shape[:-1], D)


def _reference(x, w1, w2, expert_p, expert_idxs):
    """Pure-JAX f32 reference of the GLUMLP forward."""
    D = x.shape[-1]
    E, twoH, _ = w1.shape
    H = twoH // 2
    K = expert_p.shape[-1]
    x2 = x.reshape(-1, D)
    p2 = expert_p.reshape(-1, K)
    idx2 = expert_idxs.reshape(-1, K)
    N = x2.shape[0]

    y = jnp.zeros((N, D), jnp.float32)
    for e in range(E):
        h2 = x2 @ w1[e].T
        h, g = h2[:, :H], h2[:, H:]
        act = (g * jax.nn.sigmoid(g)) * h
        ye = act @ w2[e].T
        w_tok = jnp.sum(jnp.where(idx2 == e, p2, 0.0), axis=-1, keepdims=True)
        y = y + w_tok * ye
    return y.reshape(x.shape)


if __name__ == "__main__":
    # Small, deterministic setup.
    batch, seq = 2, 8
    input_size, hidden_size = 32, 64
    num_experts, top_k = 4, 2

    key = jax.random.PRNGKey(0)
    kx, kw1, kw2, kp, ki = jax.random.split(key, 5)

    x = jax.random.normal(kx, (batch, seq, input_size), dtype=jnp.float32)
    # ParallelExperts weights: (num_experts, out_features, in_features)
    w1 = 0.05 * jax.random.normal(kw1, (num_experts, 2 * hidden_size, input_size),
                                  dtype=jnp.float32)
    w2 = 0.05 * jax.random.normal(kw2, (num_experts, input_size, hidden_size),
                                  dtype=jnp.float32)

    expert_idxs = jax.random.randint(ki, (batch, seq, top_k), 0, num_experts,
                                     dtype=jnp.int32)
    logits = jax.random.normal(kp, (batch, seq, top_k), dtype=jnp.float32)
    expert_p = jax.nn.softmax(logits, axis=-1)

    # Small token block (tn=16) to exercise the multi-block grouped grid at demo shapes;
    # defaults are tn=512 / th=1024 for real workloads.
    y = glu_mlp_forward(x, w1, w2, expert_p, expert_idxs, tn=16)
    jax.block_until_ready(y)

    y_ref = _reference(x, w1, w2, expert_p, expert_idxs)
    assert y.shape == (batch, seq, input_size)
    # Tolerances account for bf16 MXU inputs (f32 accumulation) vs. the f32 reference.
    assert jnp.allclose(y, y_ref, atol=1e-2, rtol=5e-2)

    print("KERNEL_OK")
</pallas_src>

<mosaic_0001>
module attributes {stable_mosaic.version = 11 : i64} {
  func.func private @main(%arg0: i32) attributes {dimension_semantics = [#tpu.dimension_semantics<core_parallel>], iteration_bounds = array<i64: 2>, tpu.core_type = #tpu.core_type<sc_scalar_subcore>, window_params = []} {
    return
  }
}

module attributes {stable_mosaic.version = 11 : i64} {
  func.func private @main(%arg0: i32) attributes {dimension_semantics = [#tpu.dimension_semantics<core_parallel>], iteration_bounds = array<i64: 2>, tpu.core_type = #tpu.core_type<sc_scalar_subcore>, window_params = []} {
    return
  }
}

module attributes {stable_mosaic.version = 11 : i64} {
  func.func @_glu_mlp_grouped_kernel(%arg0: i32, %arg1: i32, %arg2: memref<6xi32, #tpu.memory_space<smem>>, %arg3: memref<6xi32, #tpu.memory_space<smem>>, %arg4: memref<16x32xbf16, #tpu.memory_space<vmem>>, %arg5: memref<1x32x64xbf16, #tpu.memory_space<vmem>>, %arg6: memref<1x32x64xbf16, #tpu.memory_space<vmem>>, %arg7: memref<1x64x32xbf16, #tpu.memory_space<vmem>>, %arg8: memref<16x1xf32, #tpu.memory_space<vmem>>, %arg9: memref<16x32xf32, #tpu.memory_space<vmem>>, %arg10: memref<16x32xf32, #tpu.memory_space<vmem>>) attributes {dimension_semantics = [#tpu.dimension_semantics<parallel>, #tpu.dimension_semantics<arbitrary>], iteration_bounds = array<i64: 6, 1>, scalar_prefetch = 2 : i64, scratch_operands = 1 : i64, tpu.core_type = #tpu.core_type<tc>, window_params = [{transform_indices = @transform_0, window_bounds = array<i64: 16, 32>}, {transform_indices = @transform_1, window_bounds = array<i64: 1, 32, 64>}, {transform_indices = @transform_2, window_bounds = array<i64: 1, 32, 64>}, {transform_indices = @transform_3, window_bounds = array<i64: 1, 64, 32>}, {transform_indices = @transform_4, window_bounds = array<i64: 16, 1>}, {transform_indices = @transform_5, window_bounds = array<i64: 16, 32>}]} {
    %c0_i32 = arith.constant 0 : i32
    %0 = arith.cmpi eq, %arg1, %c0_i32 : i32
    %1 = arith.extui %0 : i1 to i32
    %c0_i32_0 = arith.constant 0 : i32
    %2 = arith.cmpi ne, %1, %c0_i32_0 : i32
    scf.if %2 {
      %cst = arith.constant 0.000000e+00 : f32
      %11 = vector.broadcast %cst : f32 to vector<16x32xf32>
      %c0 = arith.constant 0 : index
      %c0_5 = arith.constant 0 : index
      %12 = vector.load %arg10[%c0, %c0_5] : memref<16x32xf32, #tpu.memory_space<vmem>>, vector<16x32xf32>
      tpu.vector_store %arg10[%c0, %c0_5], %11 {strides = array<i32>} : memref<16x32xf32, #tpu.memory_space<vmem>>, vector<16x32xf32>,
    } else {
    }
    %3 = arith.index_cast %arg0 : i32 to index
    %4 = memref.load %arg3[%3] : memref<6xi32, #tpu.memory_space<smem>>
    %c0_i32_1 = arith.constant 0 : i32
    %5 = arith.cmpi sgt, %4, %c0_i32_1 : i32
    %6 = arith.extui %5 : i1 to i32
    %c0_i32_2 = arith.constant 0 : i32
    %7 = arith.cmpi ne, %6, %c0_i32_2 : i32
    scf.if %7 {
      %c0 = arith.constant 0 : index
      %c0_5 = arith.constant 0 : index
      %11 = vector.load %arg4[%c0, %c0_5] : memref<16x32xbf16, #tpu.memory_space<vmem>>, vector<16x32xbf16>
      %c0_6 = arith.constant 0 : index
      %c0_7 = arith.constant 0 : index
      %c0_8 = arith.constant 0 : index
      %12 = vector.load %arg5[%c0_6, %c0_7, %c0_8] : memref<1x32x64xbf16, #tpu.memory_space<vmem>>, vector<1x32x64xbf16>
      %13 = vector.shape_cast %12 : vector<1x32x64xbf16> to vector<32x64xbf16>
      %c0_9 = arith.constant 0 : index
      %c0_10 = arith.constant 0 : index
      %c0_11 = arith.constant 0 : index
      %14 = vector.load %arg6[%c0_9, %c0_10, %c0_11] : memref<1x32x64xbf16, #tpu.memory_space<vmem>>, vector<1x32x64xbf16>
      %15 = vector.shape_cast %14 : vector<1x32x64xbf16> to vector<32x64xbf16>
      %c0_12 = arith.constant 0 : index
      %c0_13 = arith.constant 0 : index
      %c0_14 = arith.constant 0 : index
      %16 = vector.load %arg7[%c0_12, %c0_13, %c0_14] : memref<1x64x32xbf16, #tpu.memory_space<vmem>>, vector<1x64x32xbf16>
      %17 = vector.shape_cast %16 : vector<1x64x32xbf16> to vector<64x32xbf16>
      %cst = arith.constant dense<0.000000e+00> : vector<16x64xf32>
      %18 = tpu.matmul %11, %13, %cst {dimension_numbers = #tpu.dot_dimension_numbers<[1], [0], [0], [1], [0, 0, 1, 1], [], []>} : vector<16x32xbf16>, vector<32x64xbf16>, vector<16x64xf32> -> vector<16x64xf32>
      %cst_15 = arith.constant dense<0.000000e+00> : vector<16x64xf32>
      %19 = tpu.matmul %11, %15, %cst_15 {dimension_numbers = #tpu.dot_dimension_numbers<[1], [0], [0], [1], [0, 0, 1, 1], [], []>} : vector<16x32xbf16>, vector<32x64xbf16>, vector<16x64xf32> -> vector<16x64xf32>
      %c0_16 = arith.constant 0 : index
      %c0_17 = arith.constant 0 : index
      %20 = vector.load %arg8[%c0_16, %c0_17] : memref<16x1xf32, #tpu.memory_space<vmem>>, vector<16x1xf32>
      %21 = arith.negf %19 : vector<16x64xf32>
      %22 = math.exp %21 : vector<16x64xf32>
      %cst_18 = arith.constant 1.000000e+00 : f32
      %23 = vector.broadcast %cst_18 : f32 to vector<16x64xf32>
      %24 = arith.addf %23, %22 : vector<16x64xf32>
      %25 = arith.divf %23, %24 : vector<16x64xf32>
      %26 = arith.mulf %19, %25 : vector<16x64xf32>
      %27 = vector.broadcast %20 : vector<16x1xf32> to vector<16x64xf32>
      %28 = arith.mulf %27, %26 : vector<16x64xf32>
      %29 = arith.mulf %28, %18 : vector<16x64xf32>
      %c0_19 = arith.constant 0 : index
      %c0_20 = arith.constant 0 : index
      %30 = vector.load %arg10[%c0_19, %c0_20] : memref<16x32xf32, #tpu.memory_space<vmem>>, vector<16x32xf32>
      %31 = arith.truncf %29 : vector<16x64xf32> to vector<16x64xbf16>
      %cst_21 = arith.constant dense<0.000000e+00> : vector<16x32xf32>
      %32 = tpu.matmul %31, %17, %cst_21 {dimension_numbers = #tpu.dot_dimension_numbers<[1], [0], [0], [1], [0, 0, 1, 1], [], []>} : vector<16x64xbf16>, vector<64x32xbf16>, vector<16x32xf32> -> vector<16x32xf32>
      %33 = arith.addf %30, %32 : vector<16x32xf32>
      %c0_22 = arith.constant 0 : index
      %c0_23 = arith.constant 0 : index
      %34 = vector.load %arg10[%c0_22, %c0_23] : memref<16x32xf32, #tpu.memory_space<vmem>>, vector<16x32xf32>
      tpu.vector_store %arg10[%c0_22, %c0_23], %33 {strides = array<i32>} : memref<16x32xf32, #tpu.memory_space<vmem>>, vector<16x32xf32>,
    } else {
    }
    %c0_i32_3 = arith.constant 0 : i32
    %8 = arith.cmpi eq, %arg1, %c0_i32_3 : i32
    %9 = arith.extui %8 : i1 to i32
    %c0_i32_4 = arith.constant 0 : i32
    %10 = arith.cmpi ne, %9, %c0_i32_4 : i32
    scf.if %10 {
      %c0 = arith.constant 0 : index
      %c0_5 = arith.constant 0 : index
      %11 = vector.load %arg10[%c0, %c0_5] : memref<16x32xf32, #tpu.memory_space<vmem>>, vector<16x32xf32>
      %c0_6 = arith.constant 0 : index
      %c0_7 = arith.constant 0 : index
      %12 = vector.load %arg9[%c0_6, %c0_7] : memref<16x32xf32, #tpu.memory_space<vmem>>, vector<16x32xf32>
      tpu.vector_store %arg9[%c0_6, %c0_7], %11 {strides = array<i32>} : memref<16x32xf32, #tpu.memory_space<vmem>>, vector<16x32xf32>,
    } else {
    }
    return
  }
  func.func @transform_0(%arg0: i32, %arg1: i32, %arg2: memref<6xi32, #tpu.memory_space<smem>>, %arg3: memref<6xi32, #tpu.memory_space<smem>>) -> (i32, i32) {
    %c0_i32 = arith.constant 0 : i32
    %c0_i32_0 = arith.constant 0 : i32
    return %arg0, %c0_i32 : i32, i32
  }
  func.func @transform_1(%arg0: i32, %arg1: i32, %arg2: memref<6xi32, #tpu.memory_space<smem>>, %arg3: memref<6xi32, #tpu.memory_space<smem>>) -> (i32, i32, i32) {
    %0 = arith.index_cast %arg0 : i32 to index
    %1 = memref.load %arg2[%0] : memref<6xi32, #tpu.memory_space<smem>>
    %c0_i32 = arith.constant 0 : i32
    %c0_i32_0 = arith.constant 0 : i32
    return %1, %c0_i32, %arg1 : i32, i32, i32
  }
  func.func @transform_2(%arg0: i32, %arg1: i32, %arg2: memref<6xi32, #tpu.memory_space<smem>>, %arg3: memref<6xi32, #tpu.memory_space<smem>>) -> (i32, i32, i32) {
    %0 = arith.index_cast %arg0 : i32 to index
    %1 = memref.load %arg2[%0] : memref<6xi32, #tpu.memory_space<smem>>
    %c0_i32 = arith.constant 0 : i32
    %c0_i32_0 = arith.constant 0 : i32
    return %1, %c0_i32, %arg1 : i32, i32, i32
  }
  func.func @transform_3(%arg0: i32, %arg1: i32, %arg2: memref<6xi32, #tpu.memory_space<smem>>, %arg3: memref<6xi32, #tpu.memory_space<smem>>) -> (i32, i32, i32) {
    %0 = arith.index_cast %arg0 : i32 to index
    %1 = memref.load %arg2[%0] : memref<6xi32, #tpu.memory_space<smem>>
    %c0_i32 = arith.constant 0 : i32
    %c0_i32_0 = arith.constant 0 : i32
    return %1, %arg1, %c0_i32 : i32, i32, i32
  }
  func.func @transform_4(%arg0: i32, %arg1: i32, %arg2: memref<6xi32, #tpu.memory_space<smem>>, %arg3: memref<6xi32, #tpu.memory_space<smem>>) -> (i32, i32) {
    %c0_i32 = arith.constant 0 : i32
    %c0_i32_0 = arith.constant 0 : i32
    return %arg0, %c0_i32 : i32, i32
  }
  func.func @transform_5(%arg0: i32, %arg1: i32, %arg2: memref<6xi32, #tpu.memory_space<smem>>, %arg3: memref<6xi32, #tpu.memory_space<smem>>) -> (i32, i32) {
    %c0_i32 = arith.constant 0 : i32
    %c0_i32_0 = arith.constant 0 : i32
    return %arg0, %c0_i32 : i32, i32
  }
}

</mosaic_0001>

<llo_original>
// kernel: custom-call.1
$region0: #{custom-call.1}
  %s0 = inlined_call_operand.vmem [shape: u32[6], index: 0, kind: output, shape index: {}]

// kernel: glu_mlp_forward.1
$region0: #{glu_mlp_forward.1}
  #allocation0 [shape = 'u32[]', space=smem, size = 0x4, offset = 0x4, fixed_abs, tag = 'smem constant byte address 0x4 - core index']
  #allocation1 [shape = 'u32[144,128]{1,0:T(1,128)}', space=vmem, size = 0x12000, scoped, tag = 'internal scratch']
  #allocation2 [shape = 'f32[16,32]{1,0:T(8,128)}', space=vmem, size = 0x2000, scoped, tag = 'scratch operand']
  #allocation3 [shape = 's32[1]{0}', space=sflag, size = 0x4, scoped, tag = 'scoped memory for glu_mlp_forward.1']
  #allocation4 [shape = 'u8[512]{0}', space=smem, size = 0x200, scoped, tag = 'prefetched SMEM operand 0']
  #allocation5 [shape = 'u8[512]{0}', space=smem, size = 0x200, scoped, tag = 'prefetched SMEM operand 1']
  %s0 = inlined_call_operand.vmem [shape: s32[6], index: 0, kind: input, shape index: {}]
  %s1 = inlined_call_operand.vmem [shape: s32[6], index: 1, kind: input, shape index: {}]
  %s2 = inlined_call_operand.vmem [shape: bf16[96,32], index: 2, kind: input, shape index: {}]
  %s3 = inlined_call_operand.vmem [shape: bf16[4,32,64], index: 3, kind: input, shape index: {}]
  %s4 = inlined_call_operand.vmem [shape: bf16[4,32,64], index: 4, kind: input, shape index: {}]
  %s5 = inlined_call_operand.vmem [shape: bf16[4,64,32], index: 5, kind: input, shape index: {}]
  %s6 = inlined_call_operand.vmem [shape: f32[96,1], index: 6, kind: input, shape index: {}]
  %s7 = inlined_call_operand.vmem [shape: f32[96,32], index: 7, kind: output, shape index: {}]
  %s8 = sld [smem:[#allocation0]]
  $region65: #{glu_mlp_forward.1} parent=0
    _
  %s10 = ssub.s32 1, %s8
  %s11 = scalar_select 0, %s10, %s8
  %s12 = sshll.u32 %s0, 4
  %s13 = int_to_ptr.vmem [resolvable:$true] %s12
  %15 = dma.vmem_to_smem %s13, 16, [#allocation4], [#allocation3]
  %s16 = sshll.u32 %s1, 4
  %s17 = int_to_ptr.vmem [resolvable:$true] %s16
  %19 = dma.vmem_to_smem %s17, 16, [#allocation5], [#allocation3]
  %20 = dma.done [#allocation3], 32
  %21 = sfence
  loop: start=0, step=1, limit=8
  $region2: #{glu_mlp_forward.1} parent=0 // loop_pre_header
    _
  $region3: #{glu_mlp_forward.1} parent=0 // loop_header
    %s23 = sphi 0, %s27
    %p24 = scmp.ge.s32.totalorder %s23, 8
    %s30 = sphi 0, %s42
    %s31 = sphi 0, %s38
    %s32 = sphi 0, %s30
    %s33 = sphi 0, %s31
    %s34 = sphi 0, %s32
    %s35 = sphi 0, %s33
    %s45 = sphi 0, %s47
    %s48 = sphi 0, %s45
    %s49 = sphi 0, %s48
    %s65 = sphi 0, %s49
    %s75 = sphi 0, %s77
    %s78 = sphi 0, %s75
    %s79 = sphi 0, %s78
    %s95 = sphi 0, %s79
    %s105 = sphi 0, %s107
    %s108 = sphi 0, %s105
    %s109 = sphi 0, %s108
    %s125 = sphi 0, %s109
    %s135 = sphi 0, %s137
    %s138 = sphi 0, %s135
    %s139 = sphi 0, %s138
    %s155 = sphi 0, %s139
    %s161 = sphi 0, %s163
    %s164 = sphi 0, %s161
    %s165 = sphi 0, %s164
    %s181 = sphi 0, %s165
    %s187 = sphi 0, %s189
    %s190 = sphi 0, %s187
    %s191 = sphi 0, %s190
    %s207 = sphi 0, %s191
  $region4: #{glu_mlp_forward.1} parent=0 // loop_header_branch
    %26 = sbr.rel (%p24) target = $region8
  $region5: #{glu_mlp_forward.1} parent=0 // loop_body
    %s28 = ssub.s32 %s23, 1
    %s29 = ssub.s32 %s23, 2
    %s36 = sadd.s32 1, %s31
    %p37 = scmp.ge.s32.totalorder %s36, 1
    %s38 = scalar_select %p37, 0, %s36
    %s39 = sadd.s32 1, %s30
    %s40 = scalar_select %p37, %s39, %s30
    %p41 = scmp.ge.s32.totalorder %s40, 6
    %s42 = scalar_select %p41, 0, %s40
    %s43 = ssub.s32 %s30, %s42
    %p44 = scmp.eq.s32.totalorder %s43, 0
    %s46 = sadd.s32 %s45, 1
    %s47 = scalar_select %p44, %s45, %s46
    %p50 = pneg %p44
    %p51 = scmp.eq.s32.totalorder %s23, 5
    %p52 = por %p50, %p51
    %p53 = scmp.ne.s32.totalorder %s45, %s48
    %p54 = scmp.eq.s32.totalorder %s23, 0
    %p55 = por %p53, %p54
    %p56 = scmp.ne.s32.totalorder %s45, %s48
    %p57 = scmp.eq.s32.totalorder %s28, 5
    %p58 = por %p56, %p57
    %p59 = scmp.ne.s32.totalorder %s48, %s49
    %p60 = scmp.eq.s32.totalorder %s28, 0
    %p61 = por %p59, %p60
    %p62 = scmp.ne.s32.totalorder %s48, %s49
    %p63 = scmp.eq.s32.totalorder %s29, 5
    %p64 = por %p62, %p63
    %p66 = scmp.ne.s32.totalorder %s49, %s65
    %p67 = scmp.eq.s32.totalorder %s29, 0
    %p68 = por %p66, %p67
    %s69 = sld [smem:[#allocation4 + %s30]]
    %s70 = sld [smem:[#allocation4 + %s42]]
    %s71 = ssub.s32 %s69, %s70
    %s72 = ssub.s32 %s31, %s38
    %s73 = sor.u32 %s71, %s72
    %p74 = scmp.eq.s32.totalorder %s73, 0
    %s76 = sadd.s32 %s75, 1
    %s77 = scalar_select %p74, %s75, %s76
    %p80 = pneg %p74
    %p81 = scmp.eq.s32.totalorder %s23, 5
    %p82 = por %p80, %p81
    %p83 = scmp.ne.s32.totalorder %s75, %s78
    %p84 = scmp.eq.s32.totalorder %s23, 0
    %p85 = por %p83, %p84
    %p86 = scmp.ne.s32.totalorder %s75, %s78
    %p87 = scmp.eq.s32.totalorder %s28, 5
    %p88 = por %p86, %p87
    %p89 = scmp.ne.s32.totalorder %s78, %s79
    %p90 = scmp.eq.s32.totalorder %s28, 0
    %p91 = por %p89, %p90
    %p92 = scmp.ne.s32.totalorder %s78, %s79
    %p93 = scmp.eq.s32.totalorder %s29, 5
    %p94 = por %p92, %p93
    %p96 = scmp.ne.s32.totalorder %s79, %s95
    %p97 = scmp.eq.s32.totalorder %s29, 0
    %p98 = por %p96, %p97
    %s99 = sld [smem:[#allocation4 + %s30]]
    %s100 = sld [smem:[#allocation4 + %s42]]
    %s101 = ssub.s32 %s99, %s100
    %s102 = ssub.s32 %s31, %s38
    %s103 = sor.u32 %s101, %s102
    %p104 = scmp.eq.s32.totalorder %s103, 0
    %s106 = sadd.s32 %s105, 1
    %s107 = scalar_select %p104, %s105, %s106
    %p110 = pneg %p104
    %p111 = scmp.eq.s32.totalorder %s23, 5
    %p112 = por %p110, %p111
    %p113 = scmp.ne.s32.totalorder %s105, %s108
    %p114 = scmp.eq.s32.totalorder %s23, 0
    %p115 = por %p113, %p114
    %p116 = scmp.ne.s32.totalorder %s105, %s108
    %p117 = scmp.eq.s32.totalorder %s28, 5
    %p118 = por %p116, %p117
    %p119 = scmp.ne.s32.totalorder %s108, %s109
    %p120 = scmp.eq.s32.totalorder %s28, 0
    %p121 = por %p119, %p120
    %p122 = scmp.ne.s32.totalorder %s108, %s109
    %p123 = scmp.eq.s32.totalorder %s29, 5
    %p124 = por %p122, %p123
    %p126 = scmp.ne.s32.totalorder %s109, %s125
    %p127 = scmp.eq.s32.totalorder %s29, 0
    %p128 = por %p126, %p127
    %s129 = sld [smem:[#allocation4 + %s30]]
    %s130 = sld [smem:[#allocation4 + %s42]]
    %s131 = ssub.s32 %s129, %s130
    %s132 = ssub.s32 %s31, %s38
    %s133 = sor.u32 %s131, %s132
    %p134 = scmp.eq.s32.totalorder %s133, 0
    %s136 = sadd.s32 %s135, 1
    %s137 = scalar_select %p134, %s135, %s136
    %p140 = pneg %p134
    %p141 = scmp.eq.s32.totalorder %s23, 5
    %p142 = por %p140, %p141
    %p143 = scmp.ne.s32.totalorder %s135, %s138
    %p144 = scmp.eq.s32.totalorder %s23, 0
    %p145 = por %p143, %p144
    %p146 = scmp.ne.s32.totalorder %s135, %s138
    %p147 = scmp.eq.s32.totalorder %s28, 5
    %p148 = por %p146, %p147
    %p149 = scmp.ne.s32.totalorder %s138, %s139
    %p150 = scmp.eq.s32.totalorder %s28, 0
    %p151 = por %p149, %p150
    %p152 = scmp.ne.s32.totalorder %s138, %s139
    %p153 = scmp.eq.s32.totalorder %s29, 5
    %p154 = por %p152, %p153
    %p156 = scmp.ne.s32.totalorder %s139, %s155
    %p157 = scmp.eq.s32.totalorder %s29, 0
    %p158 = por %p156, %p157
    %s159 = ssub.s32 %s30, %s42
    %p160 = scmp.eq.s32.totalorder %s159, 0
    %s162 = sadd.s32 %s161, 1
    %s163 = scalar_select %p160, %s161, %s162
    %p166 = pneg %p160
    %p167 = scmp.eq.s32.totalorder %s23, 5
    %p168 = por %p166, %p167
    %p169 = scmp.ne.s32.totalorder %s161, %s164
    %p170 = scmp.eq.s32.totalorder %s23, 0
    %p171 = por %p169, %p170
    %p172 = scmp.ne.s32.totalorder %s161, %s164
    %p173 = scmp.eq.s32.totalorder %s28, 5
    %p174 = por %p172, %p173
    %p175 = scmp.ne.s32.totalorder %s164, %s165
    %p176 = scmp.eq.s32.totalorder %s28, 0
    %p177 = por %p175, %p176
    %p178 = scmp.ne.s32.totalorder %s164, %s165
    %p179 = scmp.eq.s32.totalorder %s29, 5
    %p180 = por %p178, %p179
    %p182 = scmp.ne.s32.totalorder %s165, %s181
    %p183 = scmp.eq.s32.totalorder %s29, 0
    %p184 = por %p182, %p183
    %s185 = ssub.s32 %s30, %s42
    %p186 = scmp.eq.s32.totalorder %s185, 0
    %s188 = sadd.s32 %s187, 1
    %s189 = scalar_select %p186, %s187, %s188
    %p192 = pneg %p186
    %p193 = scmp.eq.s32.totalorder %s23, 5
    %p194 = por %p192, %p193
    %p195 = scmp.ne.s32.totalorder %s187, %s190
    %p196 = scmp.eq.s32.totalorder %s23, 0
    %p197 = por %p195, %p196
    %p198 = scmp.ne.s32.totalorder %s187, %s190
    %p199 = scmp.eq.s32.totalorder %s28, 5
    %p200 = por %p198, %p199
    %p201 = scmp.ne.s32.totalorder %s190, %s191
    %p202 = scmp.eq.s32.totalorder %s28, 0
    %p203 = por %p201, %p202
    %p204 = scmp.ne.s32.totalorder %s190, %s191
    %p205 = scmp.eq.s32.totalorder %s29, 5
    %p206 = por %p204, %p205
    %p208 = scmp.ne.s32.totalorder %s191, %s207
    %p209 = scmp.eq.s32.totalorder %s29, 0
    %p210 = por %p208, %p209
    %p211 = scmp.le.s32.totalorder 1, %s23
    %p212 = scmp.lt.s32.totalorder %s23, 7
    %p213 = pnand %p211, %p212
    %p214 = pneg %p213
    // Predicated region
    $region9: #{glu_mlp_forward.1} parent=5 // pred_check
      _
    $region10: #{glu_mlp_forward.1} parent=5 // pred_check_branch
      %216 = sbr.rel (%p213) target = $region12
    $region11: #{glu_mlp_forward.1} parent=5 // pred_region
      %s217 = ssub.s32 %s23, 1
    $region12: #{glu_mlp_forward.1} parent=5 // pred_fallthru
      _
    %p218 = scmp.lt.s32.totalorder %s23, 6
    // Predicated region
    $region13: #{glu_mlp_forward.1} parent=5 // pred_check
      %p219 = pneg %p218
    $region14: #{glu_mlp_forward.1} parent=5 // pred_check_branch
      %221 = sbr.rel (%p219) target = $region16
    $region15: #{glu_mlp_forward.1} parent=5 // pred_region
      // Predicated region
      $region17: #{glu_mlp_forward.1} parent=15 // pred_check
        %p222 = pneg %p55
      $region18: #{glu_mlp_forward.1} parent=15 // pred_check_branch
        %224 = sbr.rel (%p222) target = $region20
      $region19: #{glu_mlp_forward.1} parent=15 // pred_region
        %s225 = smul.u32 2, %s30
        %p226 = scmp.lt.s32.totalorder %s225, 11
        %s227 = scalar_select %p226, %s225, 11
        %s228 = smul.addr %s227, 4
        %s229 = scalar_lea.vmem %s2, %s228
        %s230 = smul.u32 2, %s30
      $region20: #{glu_mlp_forward.1} parent=15 // pred_fallthru
        _
      // Predicated region
      $region21: #{glu_mlp_forward.1} parent=15 // pred_check
        %p231 = pneg %p85
      $region22: #{glu_mlp_forward.1} parent=15 // pred_check_branch
        %233 = sbr.rel (%p231) target = $region24
      $region23: #{glu_mlp_forward.1} parent=15 // pred_region
        %s234 = sld [smem:[#allocation4 + %s30]]
        %p235 = scmp.lt.s32.totalorder %s234, 3
        %s236 = scalar_select %p235, %s234, 3
        %p237 = scmp.lt.s32.totalorder %s31, 0
        %s238 = scalar_select %p237, %s31, 0
        %s239 = smul.addr %s236, 4
        %s240 = sadd.s32 %s238, %s239
        %s241 = smul.addr %s240, 4
        %s242 = scalar_lea.vmem %s3, %s241
        %s243 = sld [smem:[#allocation4 + %s30]]
      $region24: #{glu_mlp_forward.1} parent=15 // pred_fallthru
        _
      // Predicated region
      $region25: #{glu_mlp_forward.1} parent=15 // pred_check
        %p244 = pneg %p115
      $region26: #{glu_mlp_forward.1} parent=15 // pred_check_branch
        %246 = sbr.rel (%p244) target = $region28
      $region27: #{glu_mlp_forward.1} parent=15 // pred_region
        %s247 = sld [smem:[#allocation4 + %s30]]
        %p248 = scmp.lt.s32.totalorder %s247, 3
        %s249 = scalar_select %p248, %s247, 3
        %p250 = scmp.lt.s32.totalorder %s31, 0
        %s251 = scalar_select %p250, %s31, 0
        %s252 = smul.addr %s249, 4
        %s253 = sadd.s32 %s251, %s252
        %s254 = smul.addr %s253, 4
        %s255 = scalar_lea.vmem %s4, %s254
        %s256 = sld [smem:[#allocation4 + %s30]]
      $region28: #{glu_mlp_forward.1} parent=15 // pred_fallthru
        _
      // Predicated region
      $region29: #{glu_mlp_forward.1} parent=15 // pred_check
        %p257 = pneg %p145
      $region30: #{glu_mlp_forward.1} parent=15 // pred_check_branch
        %259 = sbr.rel (%p257) target = $region32
      $region31: #{glu_mlp_forward.1} parent=15 // pred_region
        %s260 = sld [smem:[#allocation4 + %s30]]
        %s261 = smul.u32 8, %s31
        %p262 = scmp.lt.s32.totalorder %s260, 3
        %s263 = scalar_select %p262, %s260, 3
        %p264 = scmp.lt.s32.totalorder %s261, 7
        %s265 = scalar_select %p264, %s261, 7
        %s266 = smul.addr %s263, 8
        %s267 = sadd.s32 %s265, %s266
        %s268 = smul.addr %s267, 4
        %s269 = scalar_lea.vmem %s5, %s268
        %s270 = sld [smem:[#allocation4 + %s30]]
        %s271 = smul.u32 8, %s31
      $region32: #{glu_mlp_forward.1} parent=15 // pred_fallthru
        _
      // Predicated region
      $region33: #{glu_mlp_forward.1} parent=15 // pred_check
        %p272 = pneg %p171
      $region34: #{glu_mlp_forward.1} parent=15 // pred_check_branch
        %274 = sbr.rel (%p272) target = $region36
      $region35: #{glu_mlp_forward.1} parent=15 // pred_region
        %s275 = smul.u32 2, %s30
        %p276 = scmp.lt.s32.totalorder %s275, 11
        %s277 = scalar_select %p276, %s275, 11
        %s278 = smul.addr %s277, 8
        %s279 = scalar_lea.vmem %s6, %s278
        %s280 = smul.u32 2, %s30
      $region36: #{glu_mlp_forward.1} parent=15 // pred_fallthru
        _
    $region16: #{glu_mlp_forward.1} parent=5 // pred_fallthru
      _
    %p281 = scmp.le.s32.totalorder 1, %s23
    %p282 = scmp.lt.s32.totalorder %s23, 7
    %p283 = pnand %p281, %p282
    %p284 = pneg %p283
    // Predicated region
    $region37: #{glu_mlp_forward.1} parent=5 // pred_check
      _
    $region38: #{glu_mlp_forward.1} parent=5 // pred_check_branch
      %286 = sbr.rel (%p283) target = $region40
    $region39: #{glu_mlp_forward.1} parent=5 // pred_region
      %s287 = ssub.s32 %s23, 1
      %s288 = smul.u32 2, %s32
      %p289 = scmp.lt.s32.totalorder %s288, 11
      %s290 = scalar_select %p289, %s288, 11
      %s291 = smul.addr %s290, 4
      %s292 = scalar_lea.vmem %s2, %s291
      %p293 = pneg %p61
      %p294 = pneg %p58
      %s295 = sld [smem:[#allocation4 + %s32]]
      %p296 = scmp.lt.s32.totalorder %s295, 3
      %s297 = scalar_select %p296, %s295, 3
      %p298 = scmp.lt.s32.totalorder %s33, 0
      %s299 = scalar_select %p298, %s33, 0
      %s300 = smul.addr %s297, 4
      %s301 = sadd.s32 %s299, %s300
      %s302 = smul.addr %s301, 4
      %s303 = scalar_lea.vmem %s3, %s302
      %p304 = pneg %p91
      %p305 = pneg %p88
      %s306 = sld [smem:[#allocation4 + %s32]]
      %p307 = scmp.lt.s32.totalorder %s306, 3
      %s308 = scalar_select %p307, %s306, 3
      %p309 = scmp.lt.s32.totalorder %s33, 0
      %s310 = scalar_select %p309, %s33, 0
      %s311 = smul.addr %s308, 4
      %s312 = sadd.s32 %s310, %s311
      %s313 = smul.addr %s312, 4
      %s314 = scalar_lea.vmem %s4, %s313
      %p315 = pneg %p121
      %p316 = pneg %p118
      %s317 = sld [smem:[#allocation4 + %s32]]
      %s318 = smul.u32 8, %s33
      %p319 = scmp.lt.s32.totalorder %s317, 3
      %s320 = scalar_select %p319, %s317, 3
      %p321 = scmp.lt.s32.totalorder %s318, 7
      %s322 = scalar_select %p321, %s318, 7
      %s323 = smul.addr %s320, 8
      %s324 = sadd.s32 %s322, %s323
      %s325 = smul.addr %s324, 4
      %s326 = scalar_lea.vmem %s5, %s325
      %p327 = pneg %p151
      %p328 = pneg %p148
      %s329 = smul.u32 2, %s32
      %p330 = scmp.lt.s32.totalorder %s329, 11
      %s331 = scalar_select %p330, %s329, 11
      %s332 = smul.addr %s331, 8
      %s333 = scalar_lea.vmem %s6, %s332
      %p334 = pneg %p177
      %p335 = pneg %p174
      %p336 = pneg %p203
      %p337 = pneg %p200
      %s338 = smul.u32 2, %s32
      %p339 = scmp.lt.s32.totalorder %s338, 11
      %s340 = scalar_select %p339, %s338, 11
      %s341 = smul.addr %s340, 8
      %s342 = scalar_lea.vmem %s7, %s341
      %s343 = smul.u32 2, %s32
      %p344 = scmp.lt.s32.totalorder %s343, 11
      %s345 = scalar_select %p344, %s343, 11
      %s346 = smul.addr %s345, 4
      %s347 = scalar_lea.vmem %s2, %s346
      %s348 = smul.u32 2, %s32
      %s349 = sld [smem:[#allocation4 + %s32]]
      %p350 = scmp.lt.s32.totalorder %s349, 3
      %s351 = scalar_select %p350, %s349, 3
      %p352 = scmp.lt.s32.totalorder %s33, 0
      %s353 = scalar_select %p352, %s33, 0
      %s354 = smul.addr %s351, 4
      %s355 = sadd.s32 %s353, %s354
      %s356 = smul.addr %s355, 4
      %s357 = scalar_lea.vmem %s3, %s356
      %s358 = sld [smem:[#allocation4 + %s32]]
      %s359 = sld [smem:[#allocation4 + %s32]]
      %p360 = scmp.lt.s32.totalorder %s359, 3
      %s361 = scalar_select %p360, %s359, 3
      %p362 = scmp.lt.s32.totalorder %s33, 0
      %s363 = scalar_select %p362, %s33, 0
      %s364 = smul.addr %s361, 4
      %s365 = sadd.s32 %s363, %s364
      %s366 = smul.addr %s365, 4
      %s367 = scalar_lea.vmem %s4, %s366
      %s368 = sld [smem:[#allocation4 + %s32]]
      %s369 = sld [smem:[#allocation4 + %s32]]
      %s370 = smul.u32 8, %s33
      %p371 = scmp.lt.s32.totalorder %s369, 3
      %s372 = scalar_select %p371, %s369, 3
      %p373 = scmp.lt.s32.totalorder %s370, 7
      %s374 = scalar_select %p373, %s370, 7
      %s375 = smul.addr %s372, 8
      %s376 = sadd.s32 %s374, %s375
      %s377 = smul.addr %s376, 4
      %s378 = scalar_lea.vmem %s5, %s377
      %s379 = sld [smem:[#allocation4 + %s32]]
      %s380 = smul.u32 8, %s33
      %s381 = smul.u32 2, %s32
      %p382 = scmp.lt.s32.totalorder %s381, 11
      %s383 = scalar_select %p382, %s381, 11
      %s384 = smul.addr %s383, 8
      %s385 = scalar_lea.vmem %s6, %s384
      %s386 = smul.u32 2, %s32
      %s387 = smul.u32 2, %s32
      %p388 = scmp.lt.s32.totalorder %s387, 11
      %s389 = scalar_select %p388, %s387, 11
      %s390 = smul.addr %s389, 8
      %s391 = scalar_lea.vmem %s7, %s390
      %s392 = smul.u32 2, %s32
      %p394 = scmp.eq.s32.totalorder %s33, 0
      // Predicated region
      $region41: #{glu_mlp_forward.1} parent=39 // pred_check
        %p395 = pneg %p394
      $region42: #{glu_mlp_forward.1} parent=39 // pred_check_branch
        %397 = sbr.rel (%p395) target = $region44
      $region43: #{glu_mlp_forward.1} parent=39 // pred_region
        %vm398 = vcmask 261120
        %399 = vst.msk [vmem:[#allocation2] sm:$0xff] %vm398, 0.0
        %400 = vst.msk [vmem:[#allocation2 + $0x8] sm:$0xff] %vm398, 0.0
      $region44: #{glu_mlp_forward.1} parent=39 // pred_fallthru
        _
      %s401 = sld [smem:[#allocation5 + %s32]]
      %p402 = scmp.gt.s32.totalorder %s401, 0
      // Predicated region
      $region45: #{glu_mlp_forward.1} parent=39 // pred_check
        %p403 = pneg %p402
      $region46: #{glu_mlp_forward.1} parent=39 // pred_check_branch
        %405 = sbr.rel (%p403) target = $region48
      $region47: #{glu_mlp_forward.1} parent=39 // pred_region
        %v406 = vld [vmem:[%s347] sm:$0xf]
        %v407 = vld [vmem:[%s347 + $0x4] sm:$0xf]
        %v408 = vld [vmem:[%s357] sm:$0xf]
        %v409 = vld [vmem:[%s357 + $0x4] sm:$0xf]
        %v410 = vld [vmem:[%s357 + $0x8] sm:$0xf]
        %v411 = vld [vmem:[%s357 + $0xc] sm:$0xf]
        %v412 = vld [vmem:[%s367] sm:$0xf]
        %v413 = vld [vmem:[%s367 + $0x4] sm:$0xf]
        %v414 = vld [vmem:[%s367 + $0x8] sm:$0xf]
        %v415 = vld [vmem:[%s367 + $0xc] sm:$0xf]
        %v416 = vld [vmem:[%s378] sm:$0xf]
        %v417 = vld [vmem:[%s378 + $0x4] sm:$0xf]
        %v418 = vld [vmem:[%s378 + $0x8] sm:$0xf]
        %v419 = vld [vmem:[%s378 + $0xc] sm:$0xf]
        %v420 = vld [vmem:[%s378 + $0x10] sm:$0xf]
        %v421 = vld [vmem:[%s378 + $0x14] sm:$0xf]
        %v422 = vld [vmem:[%s378 + $0x18] sm:$0xf]
        %v423 = vld [vmem:[%s378 + $0x1c] sm:$0xf]
        %v426 = vunpack.c.l.b16 %v406
        %v427 = vunpack.c.l.b16 %v407
        %v428 = vpack.c.b16 %v427, %v426
        %v433 = vunpack.c.l.b16 %v408
        %v434 = vunpack.c.l.b16 %v409
        %v435 = vunpack.c.l.b16 %v410
        %v436 = vunpack.c.l.b16 %v411
        %v437 = vpack.c.b16 %v434, %v433
        %v438 = vpack.c.b16 %v436, %v435
        %vm441 = vcmask 261120
        %v443 = vsel %vm441, %v428, 0
        %445 = vmatprep.subr.bf16.mxu0 0
        %446 = vmatpush1.bf16.msra.mxu0 %v437
        %447 = vmatprep.subr.bf16.mxu0 0
        %448 = vmatpush1.bf16.msra.mxu0 %v438
        %449 = vmatprep.subr.bf16.mxu0 0
        %450 = vmatpush1.bf16.msra.mxu0 0
        %451 = vmatprep.subr.bf16.mxu0 0
        %452 = vmatpush1.bf16.msra.mxu0 0
        %453 = vmatprep.subr.bf16.mxu0 0
        %454 = vmatpush1.bf16.msra.mxu0 0
        %455 = vmatprep.subr.bf16.mxu0 0
        %456 = vmatpush1.bf16.msra.mxu0 0
        %457 = vmatprep.subr.bf16.mxu0 0
        %458 = vmatpush1.bf16.msra.mxu0 0
        %459 = vmatprep.subr.bf16.mxu0 0
        %460 = vmatpush1.bf16.msra.mxu0 0
        %461 = vmatprep.subr.bf16.mxu0 0
        %462 = vmatpush1.bf16.msra.mxu0 0
        %463 = vmatprep.subr.bf16.mxu0 0
        %464 = vmatpush1.bf16.msra.mxu0 0
        %465 = vmatprep.subr.bf16.mxu0 0
        %466 = vmatpush1.bf16.msra.mxu0 0
        %467 = vmatprep.subr.bf16.mxu0 0
        %468 = vmatpush1.bf16.msra.mxu0 0
        %469 = vmatprep.subr.bf16.mxu0 0
        %470 = vmatpush1.bf16.msra.mxu0 0
        %471 = vmatprep.subr.bf16.mxu0 0
        %472 = vmatpush1.bf16.msra.mxu0 0
        %473 = vmatprep.subr.bf16.mxu0 0
        %474 = vmatpush1.bf16.msra.mxu0 0
        %475 = vmatprep.subr.bf16.mxu0 0
        %476 = vmatpush1.bf16.msra.mxu0 0
        %477 = vmatprep.mubr.bf16.mxu0 0
        %478 = vmatmul.mubr.bf16.gmra.mrb[0].mxu0 %v443
        %v479 = vpop.f32.mrb[0].mxu0
        %v480 = vadd.f32 0.0, %v479
        %v481 = vpop.f32.mrb[0].mxu0
        %v482 = vpop.f32.mrb[0].mxu0
        %v483 = vadd.f32 0.0, %v482
        %v484 = vpop.f32.mrb[0].mxu0
        %485 = vdwg.mxu0
        %v490 = vunpack.c.l.b16 %v412
        %v491 = vunpack.c.l.b16 %v413
        %v492 = vunpack.c.l.b16 %v414
        %v493 = vunpack.c.l.b16 %v415
        %v494 = vpack.c.b16 %v491, %v490
        %v495 = vpack.c.b16 %v493, %v492
        %498 = vmatprep.subr.bf16.mxu0 0
        %499 = vmatpush1.bf16.msra.mxu0 %v494
        %500 = vmatprep.subr.bf16.mxu0 0
        %501 = vmatpush1.bf16.msra.mxu0 %v495
        %502 = vmatprep.subr.bf16.mxu0 0
        %503 = vmatpush1.bf16.msra.mxu0 0
        %504 = vmatprep.subr.bf16.mxu0 0
        %505 = vmatpush1.bf16.msra.mxu0 0
        %506 = vmatprep.subr.bf16.mxu0 0
        %507 = vmatpush1.bf16.msra.mxu0 0
        %508 = vmatprep.subr.bf16.mxu0 0
        %509 = vmatpush1.bf16.msra.mxu0 0
        %510 = vmatprep.subr.bf16.mxu0 0
        %511 = vmatpush1.bf16.msra.mxu0 0
        %512 = vmatprep.subr.bf16.mxu0 0
        %513 = vmatpush1.bf16.msra.mxu0 0
        %514 = vmatprep.subr.bf16.mxu0 0
        %515 = vmatpush1.bf16.msra.mxu0 0
        %516 = vmatprep.subr.bf16.mxu0 0
        %517 = vmatpush1.bf16.msra.mxu0 0
        %518 = vmatprep.subr.bf16.mxu0 0
        %519 = vmatpush1.bf16.msra.mxu0 0
        %520 = vmatprep.subr.bf16.mxu0 0
        %521 = vmatpush1.bf16.msra.mxu0 0
        %522 = vmatprep.subr.bf16.mxu0 0
        %523 = vmatpush1.bf16.msra.mxu0 0
        %524 = vmatprep.subr.bf16.mxu0 0
        %525 = vmatpush1.bf16.msra.mxu0 0
        %526 = vmatprep.subr.bf16.mxu0 0
        %527 = vmatpush1.bf16.msra.mxu0 0
        %528 = vmatprep.subr.bf16.mxu0 0
        %529 = vmatpush1.bf16.msra.mxu0 0
        %530 = vmatprep.mubr.bf16.mxu0 0
        %531 = vmatmul.mubr.bf16.gmra.mrb[0].mxu0 %v443
        %v532 = vpop.f32.mrb[0].mxu0
        %v533 = vadd.f32 0.0, %v532
        %v534 = vpop.f32.mrb[0].mxu0
        %v535 = vpop.f32.mrb[0].mxu0
        %v536 = vadd.f32 0.0, %v535
        %v537 = vpop.f32.mrb[0].mxu0
        %538 = vdwg.mxu0
        %v539 = vld [vmem:[%s385] sm:$0xff]
        %v540 = vld [vmem:[%s385 + $0x8] sm:$0xff]
        %v541 = vxor.u32 %v533, 2147483648
        %v542 = vxor.u32 %v536, 2147483648
        %v543 = vmul.f32 %v541, 1.442695
        %v544 = vpow.pop %v543
        %v545 = vmul.f32 %v542, 1.442695
        %v546 = vpow.pop %v545
        %v547 = vadd.f32 %v544, 1.0
        %v548 = vadd.f32 %v546, 1.0
        %v549 = vrcp.pop %v547
        %v550 = vmul.f32 1.0, %v549
        %v551 = vrcp.pop %v548
        %v552 = vmul.f32 1.0, %v551
        %v553 = vmul.f32 %v533, %v550
        %v554 = vmul.f32 %v536, %v552
        %556 = vset.pattern.permute.xlu0 0
        %557 = vperm.xlu0 %556, %v539
        %v558 = vpop.permute.xlu0 %557
        %561 = vset.pattern.permute.xlu0 0
        %562 = vperm.xlu0 %561, %v540
        %v563 = vpop.permute.xlu0 %562
        %v565 = vmul.f32 %v558, %v553
        %v566 = vmul.f32 %v563, %v554
        %v567 = vmul.f32 %v565, %v480
        %v568 = vmul.f32 %v566, %v483
        %v569 = vld [vmem:[#allocation2] sm:$0xff]
        %v570 = vld [vmem:[#allocation2 + $0x8] sm:$0xff]
        %v571 = vpack.c.bf16 %v568, %v567
        %v580 = vunpack.c.l.b16 %v416
        %v581 = vunpack.c.l.b16 %v417
        %v582 = vunpack.c.l.b16 %v418
        %v583 = vunpack.c.l.b16 %v419
        %v584 = vunpack.c.l.b16 %v420
        %v585 = vunpack.c.l.b16 %v421
        %v586 = vunpack.c.l.b16 %v422
        %v587 = vunpack.c.l.b16 %v423
        %v588 = vpack.c.b16 %v581, %v580
        %v589 = vpack.c.b16 %v583, %v582
        %v590 = vpack.c.b16 %v585, %v584
        %v591 = vpack.c.b16 %v587, %v586
        %vm596 = vcmask 523264
        %v598 = vsel %vm596, %v571, 0
        %600 = vmatprep.subr.bf16.mxu0 0
        %601 = vmatpush1.bf16.msra.mxu0 %v588
        %602 = vmatprep.subr.bf16.mxu0 0
        %603 = vmatpush1.bf16.msra.mxu0 %v589
        %604 = vmatprep.subr.bf16.mxu0 0
        %605 = vmatpush1.bf16.msra.mxu0 %v590
        %606 = vmatprep.subr.bf16.mxu0 0
        %607 = vmatpush1.bf16.msra.mxu0 %v591
        %608 = vmatprep.subr.bf16.mxu0 0
        %609 = vmatpush1.bf16.msra.mxu0 0
        %610 = vmatprep.subr.bf16.mxu0 0
        %611 = vmatpush1.bf16.msra.mxu0 0
        %612 = vmatprep.subr.bf16.mxu0 0
        %613 = vmatpush1.bf16.msra.mxu0 0
        %614 = vmatprep.subr.bf16.mxu0 0
        %615 = vmatpush1.bf16.msra.mxu0 0
        %616 = vmatprep.subr.bf16.mxu0 0
        %617 = vmatpush1.bf16.msra.mxu0 0
        %618 = vmatprep.subr.bf16.mxu0 0
        %619 = vmatpush1.bf16.msra.mxu0 0
        %620 = vmatprep.subr.bf16.mxu0 0
        %621 = vmatpush1.bf16.msra.mxu0 0
        %622 = vmatprep.subr.bf16.mxu0 0
        %623 = vmatpush1.bf16.msra.mxu0 0
        %624 = vmatprep.subr.bf16.mxu0 0
        %625 = vmatpush1.bf16.msra.mxu0 0
        %626 = vmatprep.subr.bf16.mxu0 0
        %627 = vmatpush1.bf16.msra.mxu0 0
        %628 = vmatprep.subr.bf16.mxu0 0
        %629 = vmatpush1.bf16.msra.mxu0 0
        %630 = vmatprep.subr.bf16.mxu0 0
        %631 = vmatpush1.bf16.msra.mxu0 0
        %632 = vmatprep.mubr.bf16.mxu0 0
        %633 = vmatmul.mubr.bf16.gmra.mrb[0].mxu0 %v598
        %v634 = vpop.f32.mrb[0].mxu0
        %v635 = vadd.f32 0.0, %v634
        %v636 = vpop.f32.mrb[0].mxu0
        %v637 = vpop.f32.mrb[0].mxu0
        %v638 = vadd.f32 0.0, %v637
        %v639 = vpop.f32.mrb[0].mxu0
        %640 = vdwg.mxu0
        %v641 = vadd.f32 %v569, %v635
        %v642 = vadd.f32 %v570, %v638
        %643 = vst.msk [vmem:[#allocation2] sm:$0xff] %vm441, %v641
        %644 = vst.msk [vmem:[#allocation2 + $0x8] sm:$0xff] %vm441, %v642
      $region48: #{glu_mlp_forward.1} parent=39 // pred_fallthru
        _
      // Predicated region
      $region49: #{glu_mlp_forward.1} parent=39 // pred_check
        %p645 = pneg %p394
      $region50: #{glu_mlp_forward.1} parent=39 // pred_check_branch
        %647 = sbr.rel (%p645) target = $region52
      $region51: #{glu_mlp_forward.1} parent=39 // pred_region
        %v648 = vld [vmem:[#allocation2] sm:$0xff]
        %v649 = vld [vmem:[#allocation2 + $0x8] sm:$0xff]
        %vm650 = vcmask 261120
        %651 = vst.msk [vmem:[%s391] sm:$0xff] %vm650, %v648
        %652 = vst.msk [vmem:[%s391 + $0x8] sm:$0xff] %vm650, %v649
      $region52: #{glu_mlp_forward.1} parent=39 // pred_fallthru
        _
      %s653 = smul.u32 2, %s32
      %p654 = scmp.lt.s32.totalorder %s653, 11
      %s655 = scalar_select %p654, %s653, 11
      %s656 = smul.addr %s655, 8
      %s657 = scalar_lea.vmem %s7, %s656
      // Predicated region
      $region53: #{glu_mlp_forward.1} parent=39 // pred_check
        %p658 = pneg %p200
      $region54: #{glu_mlp_forward.1} parent=39 // pred_check_branch
        %660 = sbr.rel (%p658) target = $region56
      $region55: #{glu_mlp_forward.1} parent=39 // pred_region
        %s661 = smul.u32 2, %s32
      $region56: #{glu_mlp_forward.1} parent=39 // pred_fallthru
        _
    $region40: #{glu_mlp_forward.1} parent=5 // pred_fallthru
      _
    %p662 = scmp.le.s32.totalorder 2, %s23
    // Predicated region
    $region57: #{glu_mlp_forward.1} parent=5 // pred_check
      %p663 = pneg %p662
    $region58: #{glu_mlp_forward.1} parent=5 // pred_check_branch
      %665 = sbr.rel (%p663) target = $region60
    $region59: #{glu_mlp_forward.1} parent=5 // pred_region
      %s666 = ssub.s32 %s23, 2
      // Predicated region
      $region61: #{glu_mlp_forward.1} parent=59 // pred_check
        %p667 = pneg %p206
      $region62: #{glu_mlp_forward.1} parent=59 // pred_check_branch
        %669 = sbr.rel (%p667) target = $region64
      $region63: #{glu_mlp_forward.1} parent=59 // pred_region
        %s670 = smul.u32 2, %s34
        %p671 = scmp.lt.s32.totalorder %s670, 11
        %s672 = scalar_select %p671, %s670, 11
        %s673 = smul.addr %s672, 8
        %s674 = scalar_lea.vmem %s7, %s673
      $region64: #{glu_mlp_forward.1} parent=59 // pred_fallthru
        _
    $region60: #{glu_mlp_forward.1} parent=5 // pred_fallthru
      _
  $region6: #{glu_mlp_forward.1} parent=0 // loop_footer
    %s27 = sadd.s32 1, %s23
  $region7: #{glu_mlp_forward.1} parent=0 // loop_footer_branch
    %22 = sbr.rel target = $region3
  $region8: #{glu_mlp_forward.1} parent=0 // loop_exit
    _

</llo_original>
